<compile_context>
chip_gen: v7x
topology: tpu7x:2x2x1
jax: 0.10.0
libtpu: 0.0.40
codegen_flags: <defaults>
</compile_context>

<pallas_src>
import functools

import jax
import jax.numpy as jnp
import numpy as np
from jax.experimental import pallas as pl
from jax.experimental.pallas import tpu as pltpu

ALPHA = 0.25
GAMMA = 2.0

LANES = 128
SUBLANES = 8
MAX_TILE_ROWS = 4096            # (4096, 128) f32 block = 2 MiB per input stream
N_CORES = 2                     # leading 'parallel' grid axis (both TCs on v7x)
VMEM_LIMIT_BYTES = 32 * 1024 * 1024


def _cdiv(a, b):
    return -(-a // b)


def _sublane_multiple(dtype):
    # second-minor tiling multiple: 8 for 4-byte, 16 for 2-byte, 32 for 1-byte
    return max(SUBLANES, 32 // jnp.dtype(dtype).itemsize)


def _block_loss(p, t, alpha, gamma):
    """Per-element focal loss on one (tile_rows, LANES) f32 block."""
    is_pos = t > 0.5
    # pt = exp(-BCE) == p for t==1, 1-p for t==0 (binary targets)
    pt = jnp.where(is_pos, p, 1.0 - p)
    # single log; torch clamps log at -100  =>  BCE clamped at 100
    bce = jnp.minimum(-jnp.log(pt), 100.0)
    # at = alpha.gather(0, targets): alpha for t==0, 1-alpha for t==1
    at = jnp.where(is_pos, 1.0 - alpha, alpha)
    one_minus_pt = 1.0 - pt
    if gamma == 2.0:
        w = one_minus_pt * one_minus_pt      # avoid float pow (exp+log on EUP)
    elif gamma == 1.0:
        w = one_minus_pt
    else:
        w = jnp.maximum(one_minus_pt, 0.0) ** gamma
    return at * w * bce


def _fold(f):
    """Fold (tile_rows, LANES) into the (SUBLANES, LANES) accumulator shape
    with pure per-lane VPU adds (no cross-lane XLU reduce per step)."""
    tile_rows = f.shape[0]
    # NOTE(review #10): verified-idiomatic reshape+sum; swap for explicit
    # per-vreg slice adds only if a bundle dump shows a VMEM temp.
    return f.reshape(tile_rows // SUBLANES, SUBLANES, LANES).sum(axis=0)


def _focal_kernel(inp_ref, tgt_ref, out_ref, *, alpha, gamma, rows,
                  tile_rows, tiles_per_core, ragged):
    c = pl.program_id(0)
    i = pl.program_id(1)

    @pl.when(i == 0)
    def _():
        out_ref[...] = jnp.zeros_like(out_ref)

    # Cast in-kernel: operands arrive in the caller's dtype (no wrapper copy).
    p = inp_ref[...].astype(jnp.float32)
    t = tgt_ref[...].astype(jnp.float32)

    if not ragged:
        out_ref[...] += _fold(_block_loss(p, t, alpha, gamma))
    else:
        start_row = (c * tiles_per_core + i) * tile_rows
        is_full = start_row + tile_rows <= rows

        @pl.when(is_full)
        def _():
            out_ref[...] += _fold(_block_loss(p, t, alpha, gamma))

        @pl.when(jnp.logical_not(is_full))
        def _():
            # Partial / excess block: rows past the array end hold garbage
            # (clipped DMA) -> force them to the zero-loss point (p=1, t=1).
            row_ids = jax.lax.broadcasted_iota(jnp.int32, (tile_rows, LANES), 0)
            valid = (start_row + row_ids) < rows
            pm = jnp.where(valid, p, 1.0)
            tm = jnp.where(valid, t, 1.0)
            out_ref[...] += _fold(_block_loss(pm, tm, alpha, gamma))


def weighted_focal_loss(inputs, targets, alpha=ALPHA, gamma=GAMMA):
    """Mean weighted focal loss over flat probabilities / binary targets."""
    assert inputs.shape == targets.shape
    inputs = inputs.reshape(-1)
    targets = targets.reshape(-1)
    n = inputs.shape[0]

    rem = n % LANES
    if rem:
        # TODO(synk): zero-copy tail for N % 128 != 0 (manual DMA of the exact
        # tail slice); for now pad only to the next lane multiple with the
        # zero-loss point (p=1, t=1) -- the sole remaining copy path.
        pad = LANES - rem
        inputs = jnp.pad(inputs, (0, pad), constant_values=1)
        targets = jnp.pad(targets, (0, pad), constant_values=1)

    rows = inputs.shape[0] // LANES
    inp2 = inputs.reshape(rows, LANES)       # free bitcast, no HBM traffic
    tgt2 = targets.reshape(rows, LANES)

    # ---- tiling ----------------------------------------------------------
    row_mult = max(_sublane_multiple(inp2.dtype), _sublane_multiple(tgt2.dtype))
    if rows <= row_mult:
        tile_rows = row_mult                               # single (clipped) block
    else:
        tile_rows = min(MAX_TILE_ROWS, (rows // row_mult) * row_mult)
    total_blocks = _cdiv(rows, tile_rows)
    n_cores = N_CORES if total_blocks >= N_CORES else 1
    tiles_per_core = _cdiv(total_blocks, n_cores)
    # Any block clipped at the array edge or duplicated (excess grid point on
    # the last core) must be masked in-kernel.
    ragged = (rows % tile_rows != 0) or (n_cores * tiles_per_core != total_blocks)

    if n_cores * tiles_per_core == total_blocks:
        def in_map(c, i):
            return (c * tiles_per_core + i, 0)
    else:
        def in_map(c, i):
            # clamp excess grid points into range; their data is fully masked
            return (jnp.minimum(c * tiles_per_core + i, total_blocks - 1), 0)

    in_spec = pl.BlockSpec((tile_rows, LANES), in_map)
    out_spec = pl.BlockSpec((SUBLANES, LANES), lambda c, i: (c, 0))

    kernel = functools.partial(
        _focal_kernel, alpha=float(alpha), gamma=float(gamma), rows=rows,
        tile_rows=tile_rows, tiles_per_core=tiles_per_core, ragged=ragged)

    partial_sums = pl.pallas_call(
        kernel,
        out_shape=jax.ShapeDtypeStruct((n_cores * SUBLANES, LANES), jnp.float32),
        grid_spec=pltpu.PrefetchScalarGridSpec(
            num_scalar_prefetch=0,
            grid=(n_cores, tiles_per_core),
            in_specs=[in_spec, in_spec],
            out_specs=out_spec,
        ),
        compiler_params=pltpu.CompilerParams(
            dimension_semantics=("parallel", "arbitrary"),
            vmem_limit_bytes=VMEM_LIMIT_BYTES),
    )(inp2, tgt2)

    # Tiny final cross-lane reduce + mean divide (at most (16, 128) values).
    return jnp.sum(partial_sums) / n


def _reference(inputs, targets, alpha=ALPHA, gamma=GAMMA):
    """Pure-JAX port of the PyTorch module (two logs, -100 clamp, exp(-BCE))."""
    p = inputs.reshape(-1).astype(jnp.float32)
    t = targets.reshape(-1).astype(jnp.float32)
    bce = -(t * jnp.maximum(jnp.log(p), -100.0)
            + (1.0 - t) * jnp.maximum(jnp.log(1.0 - p), -100.0))
    at = jnp.where(t > 0.5, 1.0 - alpha, alpha)
    pt = jnp.exp(-bce)
    return jnp.mean(at * (1.0 - pt) ** gamma * bce)


if __name__ == "__main__":
    key = jax.random.PRNGKey(0)
    k1, k2, k3, k4, k5, k6 = jax.random.split(key, 6)

    # (batch=2, channels=4, spatial=16x16) -> 2048 flat probabilities
    shape = (2, 4, 16, 16)
    inputs = jax.random.uniform(k1, shape, jnp.float32,
                                minval=1e-4, maxval=1.0 - 1e-4)
    targets = jax.random.bernoulli(k2, 0.3, shape).astype(jnp.float32)

    loss = jax.block_until_ready(weighted_focal_loss(inputs, targets))
    ref = jax.block_until_ready(_reference(inputs, targets))
    np.testing.assert_allclose(np.asarray(loss), np.asarray(ref),
                               rtol=1e-4, atol=1e-6)

    # ragged row count (2944 = 23 * 128): zero-copy path, in-kernel row mask,
    # both grid "cores" active
    m1 = 2944
    i1 = jax.random.uniform(k3, (m1,), jnp.float32, minval=1e-4, maxval=1.0 - 1e-4)
    t1 = jax.random.bernoulli(k4, 0.5, (m1,)).astype(jnp.float32)
    l1 = jax.block_until_ready(weighted_focal_loss(i1, t1))
    r1 = jax.block_until_ready(_reference(i1, t1))
    np.testing.assert_allclose(np.asarray(l1), np.asarray(r1),
                               rtol=1e-4, atol=1e-6)

    # fully ragged count (not a lane multiple): minimal pad-to-128 fallback
    m2 = 3001
    i2 = jax.random.uniform(k5, (m2,), jnp.float32, minval=1e-4, maxval=1.0 - 1e-4)
    t2 = jax.random.bernoulli(k6, 0.5, (m2,)).astype(jnp.float32)
    l2 = jax.block_until_ready(weighted_focal_loss(i2, t2))
    r2 = jax.block_until_ready(_reference(i2, t2))
    np.testing.assert_allclose(np.asarray(l2), np.asarray(r2),
                               rtol=1e-4, atol=1e-6)

    print("KERNEL_OK")
</pallas_src>

<mosaic_0001>
module attributes {stable_mosaic.version = 11 : i64} {
  func.func @_focal_kernel(%arg0: i32, %arg1: i32, %arg2: memref<16x128xf32, #tpu.memory_space<vmem>>, %arg3: memref<16x128xf32, #tpu.memory_space<vmem>>, %arg4: memref<8x128xf32, #tpu.memory_space<vmem>>) attributes {dimension_semantics = [#tpu.dimension_semantics<parallel>, #tpu.dimension_semantics<arbitrary>], iteration_bounds = array<i64: 1, 1>, scalar_prefetch = 0 : i64, scratch_operands = 0 : i64, tpu.core_type = #tpu.core_type<tc>, window_params = [{transform_indices = @transform_0, window_bounds = array<i64: 16, 128>}, {transform_indices = @transform_1, window_bounds = array<i64: 16, 128>}, {transform_indices = @transform_2, window_bounds = array<i64: 8, 128>}]} {
    %c0_i32 = arith.constant 0 : i32
    %0 = arith.cmpi eq, %arg1, %c0_i32 : i32
    %1 = arith.extui %0 : i1 to i32
    %c0_i32_0 = arith.constant 0 : i32
    %2 = arith.cmpi ne, %1, %c0_i32_0 : i32
    scf.if %2 {
      %cst_15 = arith.constant 0.000000e+00 : f32
      %28 = vector.broadcast %cst_15 : f32 to vector<8x128xf32>
      %c0_16 = arith.constant 0 : index
      %c0_17 = arith.constant 0 : index
      %29 = vector.load %arg4[%c0_16, %c0_17] : memref<8x128xf32, #tpu.memory_space<vmem>>, vector<8x128xf32>
      tpu.vector_store %arg4[%c0_16, %c0_17], %28 {strides = array<i32>} : memref<8x128xf32, #tpu.memory_space<vmem>>, vector<8x128xf32>,
    } else {
    }
    %c0 = arith.constant 0 : index
    %c0_1 = arith.constant 0 : index
    %3 = vector.load %arg2[%c0, %c0_1] : memref<16x128xf32, #tpu.memory_space<vmem>>, vector<16x128xf32>
    %c0_2 = arith.constant 0 : index
    %c0_3 = arith.constant 0 : index
    %4 = vector.load %arg3[%c0_2, %c0_3] : memref<16x128xf32, #tpu.memory_space<vmem>>, vector<16x128xf32>
    %c0_4 = arith.constant 0 : index
    %c0_5 = arith.constant 0 : index
    %5 = vector.load %arg4[%c0_4, %c0_5] : memref<8x128xf32, #tpu.memory_space<vmem>>, vector<8x128xf32>
    %cst = arith.constant 5.000000e-01 : f32
    %6 = vector.broadcast %cst : f32 to vector<16x128xf32>
    %7 = arith.cmpf ogt, %4, %6 : vector<16x128xf32>
    %cst_6 = arith.constant 1.000000e+00 : f32
    %8 = vector.broadcast %cst_6 : f32 to vector<16x128xf32>
    %9 = arith.subf %8, %3 : vector<16x128xf32>
    %10 = arith.select %7, %3, %9 : vector<16x128xi1>, vector<16x128xf32>
    %11 = math.log %10 : vector<16x128xf32>
    %cst_7 = arith.constant 0.000000e+00 : f32
    %12 = vector.broadcast %cst_7 : f32 to vector<16x128xf32>
    %13 = arith.subf %12, %11 : vector<16x128xf32>
    %cst_8 = arith.constant 1.000000e+02 : f32
    %14 = vector.broadcast %cst_8 : f32 to vector<16x128xf32>
    %15 = arith.minimumf %13, %14 : vector<16x128xf32>
    %cst_9 = arith.constant 7.500000e-01 : f32
    %cst_10 = arith.constant 2.500000e-01 : f32
    %16 = vector.broadcast %cst_9 : f32 to vector<16x128xf32>
    %17 = vector.broadcast %cst_10 : f32 to vector<16x128xf32>
    %18 = arith.select %7, %16, %17 : vector<16x128xi1>, vector<16x128xf32>
    %cst_11 = arith.constant 1.000000e+00 : f32
    %19 = vector.broadcast %cst_11 : f32 to vector<16x128xf32>
    %20 = arith.subf %19, %10 : vector<16x128xf32>
    %21 = arith.mulf %20, %20 : vector<16x128xf32>
    %22 = arith.mulf %18, %21 : vector<16x128xf32>
    %23 = arith.mulf %22, %15 : vector<16x128xf32>
    %24 = vector.shape_cast %23 : vector<16x128xf32> to vector<2x8x128xf32>
    %cst_12 = arith.constant dense<0.000000e+00> : vector<8x128xf32>
    %25 = vector.multi_reduction <add>, %24, %cst_12 [0] : vector<2x8x128xf32> to vector<8x128xf32>
    %26 = arith.addf %5, %25 : vector<8x128xf32>
    %c0_13 = arith.constant 0 : index
    %c0_14 = arith.constant 0 : index
    %27 = vector.load %arg4[%c0_13, %c0_14] : memref<8x128xf32, #tpu.memory_space<vmem>>, vector<8x128xf32>
    tpu.vector_store %arg4[%c0_13, %c0_14], %26 {strides = array<i32>} : memref<8x128xf32, #tpu.memory_space<vmem>>, vector<8x128xf32>,
    return
  }
  func.func @transform_0(%arg0: i32, %arg1: i32) -> (i32, i32) {
    %c1_i32 = arith.constant 1 : i32
    %0 = arith.muli %arg0, %c1_i32 : i32
    %1 = arith.addi %0, %arg1 : i32
    %c0_i32 = arith.constant 0 : i32
    %c0_i32_0 = arith.constant 0 : i32
    return %1, %c0_i32 : i32, i32
  }
  func.func @transform_1(%arg0: i32, %arg1: i32) -> (i32, i32) {
    %c1_i32 = arith.constant 1 : i32
    %0 = arith.muli %arg0, %c1_i32 : i32
    %1 = arith.addi %0, %arg1 : i32
    %c0_i32 = arith.constant 0 : i32
    %c0_i32_0 = arith.constant 0 : i32
    return %1, %c0_i32 : i32, i32
  }
  func.func @transform_2(%arg0: i32, %arg1: i32) -> (i32, i32) {
    %c0_i32 = arith.constant 0 : i32
    %c0_i32_0 = arith.constant 0 : i32
    return %arg0, %c0_i32 : i32, i32
  }
}

</mosaic_0001>

<llo_original>
// kernel: tpu_custom_call.1
$region0: #{tpu_custom_call.1}
  #allocation0 [shape = 'u32[]', space=smem, size = 0x4, offset = 0x4, fixed_abs, tag = 'smem constant byte address 0x4 - core index']
  #allocation1 [shape = 'u32[144,128]{1,0:T(1,128)}', space=vmem, size = 0x12000, scoped, tag = 'internal scratch']
  %s0 = inlined_call_operand.hbm [shape: f32[16,128], index: 0, kind: input, shape index: {}]
  %s1 = inlined_call_operand.hbm [shape: f32[16,128], index: 1, kind: input, shape index: {}]
  %s2 = inlined_call_operand.hbm [shape: f32[8,128], index: 2, kind: output, shape index: {}]
  %s3 = sld [smem:[#allocation0]]
  $region30: #{tpu_custom_call.1} parent=0
    _
  %s5 = ssub.s32 1, %s3
  %s6 = scalar_select 0, %s5, %s3
  $region1: #{tpu_custom_call.1} parent=0
    #allocation2 [shape = 'u8[8192]{0}', space=vmem, size = 0x2000, scoped, tag = 'input window, operand 0, single buffered']
    #allocation3 [shape = 's32[1]{0}', space=sflag, size = 0x4, scoped, tag = 'scoped memory for tpu_custom_call.1']
    #allocation4 [shape = 's32[1]{0}', space=sflag, size = 0x4, scoped, tag = 'scoped memory for tpu_custom_call.1']
    #allocation5 [shape = 'u8[8192]{0}', space=vmem, size = 0x2000, scoped, tag = 'input window, operand 1, single buffered']
    #allocation6 [shape = 's32[1]{0}', space=sflag, size = 0x4, scoped, tag = 'scoped memory for tpu_custom_call.1']
    #allocation7 [shape = 'u8[4096]{0}', space=vmem, size = 0x1000, scoped, tag = 'output window, operand 0, single buffered']
    %7 = vsyncpa [#allocation3], 0
    %8 = vsyncpa [#allocation6], 0
    %9 = vsyncpa [#allocation4], 0
    // Predicated region
    $region2: #{tpu_custom_call.1} parent=1 // pred_check
      _
    $region3: #{tpu_custom_call.1} parent=1 // pred_check_branch
      %11 = sbr.rel (0) target = $region5
    $region4: #{tpu_custom_call.1} parent=1 // pred_region
      %s12 = sadd.s32 0, 0
      %s13 = smul.u32 2, %s12
      %s15 = ssub.s32 256, 256
      %16 = vsyncadd [#allocation3], %s15
      %s17 = smul.addr %s13, 128
      %s18 = scalar_lea.hbm %s0, %s17
      %s19 = sshll.u32 [#allocation2], 4
      %s20 = int_to_ptr.vmem [resolvable:$true] %s19
      %25 = dma.hbm_to_vmem [thread:$0]  %s18, 256, %s20, [#allocation3], 128, 128, 8
    $region5: #{tpu_custom_call.1} parent=1 // pred_fallthru
      _
    // Predicated region
    $region6: #{tpu_custom_call.1} parent=1 // pred_check
      _
    $region7: #{tpu_custom_call.1} parent=1 // pred_check_branch
      %27 = sbr.rel (0) target = $region9
    $region8: #{tpu_custom_call.1} parent=1 // pred_region
      %s28 = sadd.s32 0, 0
      %s29 = smul.u32 2, %s28
      %s31 = ssub.s32 256, 256
      %32 = vsyncadd [#allocation6], %s31
      %s33 = smul.addr %s29, 128
      %s34 = scalar_lea.hbm %s1, %s33
      %s35 = sshll.u32 [#allocation5], 4
      %s36 = int_to_ptr.vmem [resolvable:$true] %s35
      %41 = dma.hbm_to_vmem [thread:$0]  %s34, 256, %s36, [#allocation6], 128, 128, 8
    $region9: #{tpu_custom_call.1} parent=1 // pred_fallthru
      _
    // Predicated region
    $region10: #{tpu_custom_call.1} parent=1 // pred_check
      _
    $region11: #{tpu_custom_call.1} parent=1 // pred_check_branch
      %43 = sbr.rel (0) target = $region13
    $region12: #{tpu_custom_call.1} parent=1 // pred_region
      %44 = dma.done [#allocation3], 256
    $region13: #{tpu_custom_call.1} parent=1 // pred_fallthru
      _
    // Predicated region
    $region14: #{tpu_custom_call.1} parent=1 // pred_check
      _
    $region15: #{tpu_custom_call.1} parent=1 // pred_check_branch
      %46 = sbr.rel (0) target = $region17
    $region16: #{tpu_custom_call.1} parent=1 // pred_region
      %47 = dma.done [#allocation6], 256
    $region17: #{tpu_custom_call.1} parent=1 // pred_fallthru
      _
    %s48 = sadd.s32 0, 0
    %s49 = smul.u32 2, %s48
    %s50 = sadd.s32 0, 0
    %s51 = smul.u32 2, %s50
    %p52 = scmp.eq.s32.totalorder 0, 0
    // Predicated region
    $region18: #{tpu_custom_call.1} parent=1 // pred_check
      %p53 = pneg %p52
    $region19: #{tpu_custom_call.1} parent=1 // pred_check_branch
      %55 = sbr.rel (%p53) target = $region21
    $region20: #{tpu_custom_call.1} parent=1 // pred_region
      %56 = vst [vmem:[#allocation7] sm:$0xff] 0.0
    $region21: #{tpu_custom_call.1} parent=1 // pred_fallthru
      _
    %v57 = vld [vmem:[#allocation2] sm:$0xff]
    %v58 = vld [vmem:[#allocation2 + $0x8] sm:$0xff]
    %v59 = vld [vmem:[#allocation5] sm:$0xff]
    %v60 = vld [vmem:[#allocation5 + $0x8] sm:$0xff]
    %v61 = vld [vmem:[#allocation7] sm:$0xff]
    %vm62 = vcmp.gt.f32.partialorder %v59, 0.5
    %vm63 = vcmp.gt.f32.partialorder %v60, 0.5
    %v64 = vsub.f32 1.0, %v57
    %v65 = vsub.f32 1.0, %v58
    %v66 = vsel %vm62, %v57, %v64
    %v67 = vsel %vm63, %v58, %v65
    %v68 = vlog2.pop %v66
    %v69 = vmul.f32 %v68, 0.6931472
    %v70 = vlog2.pop %v67
    %v71 = vmul.f32 %v70, 0.6931472
    %v72 = vsub.f32 0.0, %v69
    %v73 = vsub.f32 0.0, %v71
    %v74 = vmin.f32 %v72, 100.0
    %v75 = vmin.f32 %v73, 100.0
    %v76 = vsel %vm62, 0.75, 0.25
    %v77 = vsel %vm63, 0.75, 0.25
    %v78 = vsub.f32 1.0, %v66
    %v79 = vsub.f32 1.0, %v67
    %v80 = vmul.f32 %v78, %v78
    %v81 = vmul.f32 %v79, %v79
    %v82 = vmul.f32 %v76, %v80
    %v83 = vmul.f32 %v77, %v81
    %v84 = vmul.f32 %v82, %v74
    %v85 = vmul.f32 %v83, %v75
    %v86 = vadd.f32 %v84, %v85
    %v87 = vadd.f32 %v61, %v86
    %88 = vst [vmem:[#allocation7] sm:$0xff] %v87
    // Predicated region
    $region22: #{tpu_custom_call.1} parent=1 // pred_check
      _
    $region23: #{tpu_custom_call.1} parent=1 // pred_check_branch
      %90 = sbr.rel (0) target = $region25
    $region24: #{tpu_custom_call.1} parent=1 // pred_region
      %s92 = ssub.s32 128, 128
      %93 = vsyncadd [#allocation4], %s92
      %s95 = sshll.u32 [#allocation7], 4
      %s96 = int_to_ptr.vmem [resolvable:$true] %s95
      %98 = dma.vmem_to_hbm [thread:$0]  %s96, 128, %s2, [#allocation4]
    $region25: #{tpu_custom_call.1} parent=1 // pred_fallthru
      _
    // Predicated region
    $region26: #{tpu_custom_call.1} parent=1 // pred_check
      _
    $region27: #{tpu_custom_call.1} parent=1 // pred_check_branch
      %100 = sbr.rel (0) target = $region29
    $region28: #{tpu_custom_call.1} parent=1 // pred_region
      %101 = dma.done [#allocation4], 128
    $region29: #{tpu_custom_call.1} parent=1 // pred_fallthru
      _
    %102 = vsyncpa [#allocation3], 1
    %103 = vsyncpa [#allocation6], 1
    %104 = vsyncpa [#allocation4], 1

</llo_original>
